<compile_context>
chip_gen: v5e
topology: v5e:2x2
jax: 0.10.0
libtpu: 0.0.40
codegen_flags: <defaults>
</compile_context>

<pallas_src>
import jax
import jax.numpy as jnp
from jax import lax
from jax.experimental import pallas as pl
from jax.experimental.pallas import tpu as pltpu


def _round_up(x, m):
    return ((x + m - 1) // m) * m


def _apply_nl(h, nl):
    """Nonlinearities supported by the PyTorch module's nl_selector."""
    if nl == 'tanh':
        return jnp.tanh(h)
    if nl == 'relu':
        return jnp.maximum(h, 0.0)
    if nl == 'sigmoid':
        return jax.nn.sigmoid(h)
    if nl == 'symrelu':                       # SymReLU(threshold=1): relu(1 - |x|)
        return jnp.maximum(1.0 - jnp.abs(h), 0.0)
    if nl is None:
        return h
    raise ValueError(f'unknown nonlinearity: {nl!r}')


def _make_mlp_kernel(num_linear, nl):
    """Fused kernel for `num_linear` Linear layers with `nl` between them.

    Inside the kernel, activations are (features, batch_tile): batch on lanes.
    Weights are in PyTorch nn.Linear layout (out_features, in_features), biases
    are reshaped to (out_features, 1) so they broadcast over the lane axis.
    """

    def kernel(x_ref, *refs):
        # refs = (w0, b0, w1, b1, ..., w_{L-1}, b_{L-1}, out_ref)
        out_ref = refs[-1]
        x = x_ref[...]                                        # (bt, n_in) f32

        # First layer: NT contraction  W0 (out,in) x X (bt,in) -> (out, bt).
        # This is the q @ k.T pattern, natively supported by the MXU, and lets
        # us read x in its natural layout (no wrapper transpose of x).
        h = lax.dot_general(refs[0][...], x,
                            (((1,), (1,)), ((), ())),
                            preferred_element_type=jnp.float32)
        h = h + refs[1][...]                                  # (out, 1) bias

        for i in range(1, num_linear):
            h = _apply_nl(h, nl)
            w = refs[2 * i][...]                              # (out, in)
            b = refs[2 * i + 1][...]                          # (out, 1)
            h = jnp.dot(w, h, preferred_element_type=jnp.float32) + b

        out_ref[...] = h.astype(out_ref.dtype)                # (n_outs, bt) lane-dense

    return kernel


def mlp_pallas(x, weights, biases, *, nl='tanh', batch_tile=512):
    """Run the fused MLP kernel.

    Args:
      x:       (B, n_inputs) float32
      weights: list of (out_features, in_features) arrays (PyTorch layout)
      biases:  list of (out_features,) arrays
      nl:      nonlinearity between layers ('tanh'|'relu'|'sigmoid'|'symrelu'|None)
    Returns:
      (B, n_outs) float32
    """
    B, n_in = x.shape
    num_linear = len(weights)
    n_outs = weights[-1].shape[0]

    # Lane-aligned batch tile; pad B up to a multiple of it (no divisibility
    # requirement on the caller's B).
    bt = _round_up(min(batch_tile, _round_up(B, 128)), 128)
    B_pad = _round_up(B, bt)
    grid = B_pad // bt

    x_p = jnp.pad(x, ((0, B_pad - B), (0, 0))) if B_pad != B else x
    biases2d = [b.reshape(-1, 1).astype(jnp.float32) for b in biases]

    in_specs = [pl.BlockSpec((bt, n_in), lambda i: (i, 0))]   # x: batch tiled
    wb_args = []
    for w, b in zip(weights, biases2d):
        in_specs.append(pl.BlockSpec(w.shape, lambda i: (0, 0)))   # resident
        in_specs.append(pl.BlockSpec(b.shape, lambda i: (0, 0)))   # resident
        wb_args.extend([w.astype(jnp.float32), b])

    out_spec = pl.BlockSpec((n_outs, bt), lambda i: (0, i))   # lane-dense store

    out_t = pl.pallas_call(
        _make_mlp_kernel(num_linear, nl),
        out_shape=jax.ShapeDtypeStruct((n_outs, B_pad), jnp.float32),
        grid_spec=pl.GridSpec(
            grid=(grid,),
            in_specs=in_specs,
            out_specs=out_spec,
        ),
        compiler_params=pltpu.CompilerParams(
            dimension_semantics=("parallel",),
        ),
    )(x_p, *wb_args)

    return out_t[:, :B].T                                     # (B, n_outs)


def init_mlp_params(key, n_inputs, n_hidden, n_outs, n_layers,
                    en_bias=True, b_low=None, b_high=None,
                    ones_first_layer=False):
    """Deterministic init mimicking the PyTorch MLP:
    W, b ~ U(-1/sqrt(fan_in), 1/sqrt(fan_in)); optional linspace first-layer
    bias (b_low..b_high) and all-ones first-layer weights.  Weights are kept
    in the (out_features, in_features) PyTorch layout."""
    if b_low is None and b_high is not None:
        b_low = -b_high
    custom_first_bias = (b_low is not None) and (b_high is not None)

    dims = [(n_inputs, n_hidden)]
    for _ in range(n_layers - 1):
        dims.append((n_hidden, n_hidden))
    dims.append((n_hidden, n_outs))

    weights, biases = [], []
    for li, (fan_in, fan_out) in enumerate(dims):
        key, kw, kb = jax.random.split(key, 3)
        bound = 1.0 / jnp.sqrt(jnp.float32(fan_in))
        if li == 0 and ones_first_layer:
            w = jnp.ones((fan_out, fan_in), jnp.float32)
        else:
            w = jax.random.uniform(kw, (fan_out, fan_in), jnp.float32, -bound, bound)
        if li == 0 and custom_first_bias:
            b = jnp.linspace(b_low, b_high, fan_out, dtype=jnp.float32)
        elif en_bias:
            b = jax.random.uniform(kb, (fan_out,), jnp.float32, -bound, bound)
        else:
            b = jnp.zeros((fan_out,), jnp.float32)
        weights.append(w)
        biases.append(b)
    return weights, biases


def mlp_reference(x, weights, biases, nl='tanh'):
    """Pure-JAX reference matching the PyTorch MLP forward."""
    h = x
    for i, (w, b) in enumerate(zip(weights, biases)):
        h = h @ w.T + b
        if i < len(weights) - 1:
            h = _apply_nl(h, nl)
    return h


if __name__ == "__main__":
    # Small MLP: n_inputs=16, n_hidden=32, n_outs=8, n_layers=2, nl='tanh'.
    n_inputs, n_hidden, n_outs, n_layers = 16, 32, 8, 2

    key = jax.random.PRNGKey(0)
    key, kx = jax.random.split(key)
    weights, biases = init_mlp_params(key, n_inputs, n_hidden, n_outs, n_layers)

    # Case 1: small batch -> single lane-aligned tile (grid of 1 step).
    B = 16
    x = jax.random.normal(kx, (B, n_inputs), jnp.float32)
    out = jax.block_until_ready(mlp_pallas(x, weights, biases))
    ref = mlp_reference(x, weights, biases)
    assert out.shape == (B, n_outs)
    assert jnp.allclose(out, ref, atol=1e-5, rtol=1e-5), "mismatch vs reference (B=16)"

    # Case 2: batch not a multiple of the tile -> padded, multi-step parallel grid.
    key, kx2 = jax.random.split(key)
    B2 = 300
    x2 = jax.random.normal(kx2, (B2, n_inputs), jnp.float32)
    out2 = jax.block_until_ready(mlp_pallas(x2, weights, biases, batch_tile=256))
    ref2 = mlp_reference(x2, weights, biases)
    assert out2.shape == (B2, n_outs)
    assert jnp.allclose(out2, ref2, atol=1e-5, rtol=1e-5), "mismatch vs reference (B=300)"

    # Case 3: default n_layers=1 path with a different nonlinearity (relu).
    key, kx3 = jax.random.split(key)
    w3, b3 = init_mlp_params(key, n_inputs, n_hidden, n_outs, n_layers=1)
    x3 = jax.random.normal(kx3, (64, n_inputs), jnp.float32)
    out3 = jax.block_until_ready(mlp_pallas(x3, w3, b3, nl='relu'))
    ref3 = mlp_reference(x3, w3, b3, nl='relu')
    assert jnp.allclose(out3, ref3, atol=1e-5, rtol=1e-5), "mismatch vs reference (relu)"

    print("KERNEL_OK")
</pallas_src>

<mosaic_0001>
module attributes {stable_mosaic.version = 11 : i64} {
  func.func @kernel(%arg0: i32, %arg1: memref<128x16xf32, #tpu.memory_space<vmem>>, %arg2: memref<32x16xf32, #tpu.memory_space<vmem>>, %arg3: memref<32x1xf32, #tpu.memory_space<vmem>>, %arg4: memref<32x32xf32, #tpu.memory_space<vmem>>, %arg5: memref<32x1xf32, #tpu.memory_space<vmem>>, %arg6: memref<8x32xf32, #tpu.memory_space<vmem>>, %arg7: memref<8x1xf32, #tpu.memory_space<vmem>>, %arg8: memref<8x128xf32, #tpu.memory_space<vmem>>) attributes {dimension_semantics = [#tpu.dimension_semantics<parallel>], iteration_bounds = array<i64: 1>, scalar_prefetch = 0 : i64, scratch_operands = 0 : i64, tpu.core_type = #tpu.core_type<tc>, window_params = [{transform_indices = @transform_0, window_bounds = array<i64: 128, 16>}, {pipeline_mode = #tpu.pipeline_mode<synchronous>, transform_indices = @transform_1, window_bounds = array<i64: 32, 16>}, {pipeline_mode = #tpu.pipeline_mode<synchronous>, transform_indices = @transform_2, window_bounds = array<i64: 32, 1>}, {pipeline_mode = #tpu.pipeline_mode<synchronous>, transform_indices = @transform_3, window_bounds = array<i64: 32, 32>}, {pipeline_mode = #tpu.pipeline_mode<synchronous>, transform_indices = @transform_4, window_bounds = array<i64: 32, 1>}, {pipeline_mode = #tpu.pipeline_mode<synchronous>, transform_indices = @transform_5, window_bounds = array<i64: 8, 32>}, {pipeline_mode = #tpu.pipeline_mode<synchronous>, transform_indices = @transform_6, window_bounds = array<i64: 8, 1>}, {transform_indices = @transform_7, window_bounds = array<i64: 8, 128>}]} {
    %c0 = arith.constant 0 : index
    %c0_0 = arith.constant 0 : index
    %0 = vector.load %arg1[%c0, %c0_0] : memref<128x16xf32, #tpu.memory_space<vmem>>, vector<128x16xf32>
    %c0_1 = arith.constant 0 : index
    %c0_2 = arith.constant 0 : index
    %1 = vector.load %arg2[%c0_1, %c0_2] : memref<32x16xf32, #tpu.memory_space<vmem>>, vector<32x16xf32>
    %cst = arith.constant dense<0.000000e+00> : vector<32x128xf32>
    %2 = tpu.matmul %1, %0, %cst {dimension_numbers = #tpu.dot_dimension_numbers<[1], [1], [0], [0], [0, 0, 1, 0], [], []>} : vector<32x16xf32>, vector<128x16xf32>, vector<32x128xf32> -> vector<32x128xf32>
    %c0_3 = arith.constant 0 : index
    %c0_4 = arith.constant 0 : index
    %3 = vector.load %arg3[%c0_3, %c0_4] : memref<32x1xf32, #tpu.memory_space<vmem>>, vector<32x1xf32>
    %4 = vector.broadcast %3 : vector<32x1xf32> to vector<32x128xf32>
    %5 = arith.addf %2, %4 : vector<32x128xf32>
    %6 = math.tanh %5 : vector<32x128xf32>
    %c0_5 = arith.constant 0 : index
    %c0_6 = arith.constant 0 : index
    %7 = vector.load %arg4[%c0_5, %c0_6] : memref<32x32xf32, #tpu.memory_space<vmem>>, vector<32x32xf32>
    %c0_7 = arith.constant 0 : index
    %c0_8 = arith.constant 0 : index
    %8 = vector.load %arg5[%c0_7, %c0_8] : memref<32x1xf32, #tpu.memory_space<vmem>>, vector<32x1xf32>
    %cst_9 = arith.constant dense<0.000000e+00> : vector<32x128xf32>
    %9 = tpu.matmul %7, %6, %cst_9 {dimension_numbers = #tpu.dot_dimension_numbers<[1], [0], [0], [1], [0, 0, 1, 1], [], []>} : vector<32x32xf32>, vector<32x128xf32>, vector<32x128xf32> -> vector<32x128xf32>
    %10 = vector.broadcast %8 : vector<32x1xf32> to vector<32x128xf32>
    %11 = arith.addf %9, %10 : vector<32x128xf32>
    %12 = math.tanh %11 : vector<32x128xf32>
    %c0_10 = arith.constant 0 : index
    %c0_11 = arith.constant 0 : index
    %13 = vector.load %arg6[%c0_10, %c0_11] : memref<8x32xf32, #tpu.memory_space<vmem>>, vector<8x32xf32>
    %c0_12 = arith.constant 0 : index
    %c0_13 = arith.constant 0 : index
    %14 = vector.load %arg7[%c0_12, %c0_13] : memref<8x1xf32, #tpu.memory_space<vmem>>, vector<8x1xf32>
    %cst_14 = arith.constant dense<0.000000e+00> : vector<8x128xf32>
    %15 = tpu.matmul %13, %12, %cst_14 {dimension_numbers = #tpu.dot_dimension_numbers<[1], [0], [0], [1], [0, 0, 1, 1], [], []>} : vector<8x32xf32>, vector<32x128xf32>, vector<8x128xf32> -> vector<8x128xf32>
    %16 = vector.broadcast %14 : vector<8x1xf32> to vector<8x128xf32>
    %17 = arith.addf %15, %16 : vector<8x128xf32>
    %c0_15 = arith.constant 0 : index
    %c0_16 = arith.constant 0 : index
    %18 = vector.load %arg8[%c0_15, %c0_16] : memref<8x128xf32, #tpu.memory_space<vmem>>, vector<8x128xf32>
    tpu.vector_store %arg8[%c0_15, %c0_16], %17 {strides = array<i32>} : memref<8x128xf32, #tpu.memory_space<vmem>>, vector<8x128xf32>,
    return
  }
  func.func @transform_0(%arg0: i32) -> (i32, i32) {
    %c0_i32 = arith.constant 0 : i32
    %c0_i32_0 = arith.constant 0 : i32
    return %arg0, %c0_i32 : i32, i32
  }
  func.func @transform_1(%arg0: i32) -> (i32, i32) {
    %c0_i32 = arith.constant 0 : i32
    %c0_i32_0 = arith.constant 0 : i32
    %c0_i32_1 = arith.constant 0 : i32
    return %c0_i32, %c0_i32_0 : i32, i32
  }
  func.func @transform_2(%arg0: i32) -> (i32, i32) {
    %c0_i32 = arith.constant 0 : i32
    %c0_i32_0 = arith.constant 0 : i32
    %c0_i32_1 = arith.constant 0 : i32
    return %c0_i32, %c0_i32_0 : i32, i32
  }
  func.func @transform_3(%arg0: i32) -> (i32, i32) {
    %c0_i32 = arith.constant 0 : i32
    %c0_i32_0 = arith.constant 0 : i32
    %c0_i32_1 = arith.constant 0 : i32
    return %c0_i32, %c0_i32_0 : i32, i32
  }
  func.func @transform_4(%arg0: i32) -> (i32, i32) {
    %c0_i32 = arith.constant 0 : i32
    %c0_i32_0 = arith.constant 0 : i32
    %c0_i32_1 = arith.constant 0 : i32
    return %c0_i32, %c0_i32_0 : i32, i32
  }
  func.func @transform_5(%arg0: i32) -> (i32, i32) {
    %c0_i32 = arith.constant 0 : i32
    %c0_i32_0 = arith.constant 0 : i32
    %c0_i32_1 = arith.constant 0 : i32
    return %c0_i32, %c0_i32_0 : i32, i32
  }
  func.func @transform_6(%arg0: i32) -> (i32, i32) {
    %c0_i32 = arith.constant 0 : i32
    %c0_i32_0 = arith.constant 0 : i32
    %c0_i32_1 = arith.constant 0 : i32
    return %c0_i32, %c0_i32_0 : i32, i32
  }
  func.func @transform_7(%arg0: i32) -> (i32, i32) {
    %c0_i32 = arith.constant 0 : i32
    %c0_i32_0 = arith.constant 0 : i32
    return %c0_i32, %arg0 : i32, i32
  }
}

</mosaic_0001>

<llo_original>
// kernel: tpu_custom_call.1
$region0: #{tpu_custom_call.1}
  #allocation0 [shape = 'u32[]', space=smem, size = 0x4, offset = 0x4, fixed_abs, tag = 'smem constant byte address 0x4 - core index']
  #allocation1 [shape = 'u32[72,128]{1,0:T(1,128)}', space=vmem, size = 0x9000, scoped, tag = 'internal scratch']
  %s0 = inlined_call_operand.vmem [shape: f32[128,16], index: 0, kind: input, shape index: {}]
  %s1 = inlined_call_operand.vmem [shape: f32[32,16], index: 1, kind: input, shape index: {}]
  %s2 = inlined_call_operand.vmem [shape: f32[32,1], index: 2, kind: input, shape index: {}]
  %s3 = inlined_call_operand.vmem [shape: f32[32,32], index: 3, kind: input, shape index: {}]
  %s4 = inlined_call_operand.vmem [shape: f32[32,1], index: 4, kind: input, shape index: {}]
  %s5 = inlined_call_operand.vmem [shape: f32[8,32], index: 5, kind: input, shape index: {}]
  %s6 = inlined_call_operand.vmem [shape: f32[8,1], index: 6, kind: input, shape index: {}]
  %s7 = inlined_call_operand.hbm [shape: f32[8,128], index: 7, kind: output, shape index: {}]
  %s8 = sld [smem:[#allocation0]]
  $region38: #{tpu_custom_call.1} parent=0
    _
  %s10 = ssub.s32 1, %s8
  %s11 = scalar_select 0, %s10, %s8
  $region1: #{tpu_custom_call.1} parent=0
    #allocation2 [shape = 'u8[4096]{0}', space=vmem, size = 0x1000, scoped, tag = 'output window, operand 0, single buffered']
    #allocation3 [shape = 's32[1]{0}', space=sflag, size = 0x4, scoped, tag = 'scoped memory for tpu_custom_call.1']
    %12 = vsyncpa [#allocation3], 0
    // Predicated region
    $region2: #{tpu_custom_call.1} parent=1 // pred_check
      _
    $region3: #{tpu_custom_call.1} parent=1 // pred_check_branch
      %14 = sbr.rel (0) target = $region5
    $region4: #{tpu_custom_call.1} parent=1 // pred_region
      _
    $region5: #{tpu_custom_call.1} parent=1 // pred_fallthru
      _
    // Predicated region
    $region6: #{tpu_custom_call.1} parent=1 // pred_check
      _
    $region7: #{tpu_custom_call.1} parent=1 // pred_check_branch
      %16 = sbr.rel (0) target = $region9
    $region8: #{tpu_custom_call.1} parent=1 // pred_region
      _
    $region9: #{tpu_custom_call.1} parent=1 // pred_fallthru
      _
    // Predicated region
    $region10: #{tpu_custom_call.1} parent=1 // pred_check
      _
    $region11: #{tpu_custom_call.1} parent=1 // pred_check_branch
      %18 = sbr.rel (0) target = $region13
    $region12: #{tpu_custom_call.1} parent=1 // pred_region
      _
    $region13: #{tpu_custom_call.1} parent=1 // pred_fallthru
      _
    // Predicated region
    $region14: #{tpu_custom_call.1} parent=1 // pred_check
      _
    $region15: #{tpu_custom_call.1} parent=1 // pred_check_branch
      %20 = sbr.rel (0) target = $region17
    $region16: #{tpu_custom_call.1} parent=1 // pred_region
      _
    $region17: #{tpu_custom_call.1} parent=1 // pred_fallthru
      _
    // Predicated region
    $region18: #{tpu_custom_call.1} parent=1 // pred_check
      _
    $region19: #{tpu_custom_call.1} parent=1 // pred_check_branch
      %22 = sbr.rel (0) target = $region21
    $region20: #{tpu_custom_call.1} parent=1 // pred_region
      _
    $region21: #{tpu_custom_call.1} parent=1 // pred_fallthru
      _
    // Predicated region
    $region22: #{tpu_custom_call.1} parent=1 // pred_check
      _
    $region23: #{tpu_custom_call.1} parent=1 // pred_check_branch
      %24 = sbr.rel (0) target = $region25
    $region24: #{tpu_custom_call.1} parent=1 // pred_region
      _
    $region25: #{tpu_custom_call.1} parent=1 // pred_fallthru
      _
    // Predicated region
    $region26: #{tpu_custom_call.1} parent=1 // pred_check
      _
    $region27: #{tpu_custom_call.1} parent=1 // pred_check_branch
      %26 = sbr.rel (0) target = $region29
    $region28: #{tpu_custom_call.1} parent=1 // pred_region
      _
    $region29: #{tpu_custom_call.1} parent=1 // pred_fallthru
      _
    %v27 = vld [vmem:[%s0] sm:$0xff]
    %v28 = vld [vmem:[%s0 + $0x8] sm:$0xff]
    %v29 = vld [vmem:[%s0 + $0x10] sm:$0xff]
    %v30 = vld [vmem:[%s0 + $0x18] sm:$0xff]
    %v31 = vld [vmem:[%s0 + $0x20] sm:$0xff]
    %v32 = vld [vmem:[%s0 + $0x28] sm:$0xff]
    %v33 = vld [vmem:[%s0 + $0x30] sm:$0xff]
    %v34 = vld [vmem:[%s0 + $0x38] sm:$0xff]
    %v35 = vld [vmem:[%s0 + $0x40] sm:$0xff]
    %v36 = vld [vmem:[%s0 + $0x48] sm:$0xff]
    %v37 = vld [vmem:[%s0 + $0x50] sm:$0xff]
    %v38 = vld [vmem:[%s0 + $0x58] sm:$0xff]
    %v39 = vld [vmem:[%s0 + $0x60] sm:$0xff]
    %v40 = vld [vmem:[%s0 + $0x68] sm:$0xff]
    %v41 = vld [vmem:[%s0 + $0x70] sm:$0xff]
    %v42 = vld [vmem:[%s0 + $0x78] sm:$0xff]
    %v43 = vld [vmem:[%s1] sm:$0xff]
    %v44 = vld [vmem:[%s1 + $0x8] sm:$0xff]
    %v45 = vld [vmem:[%s1 + $0x10] sm:$0xff]
    %v46 = vld [vmem:[%s1 + $0x18] sm:$0xff]
    %v47 = vld [vmem:[%s2] sm:$0xff]
    %v48 = vld [vmem:[%s2 + $0x8] sm:$0xff]
    %v49 = vld [vmem:[%s2 + $0x10] sm:$0xff]
    %v50 = vld [vmem:[%s2 + $0x18] sm:$0xff]
    %52 = vset.pattern.permute.xlu0 0
    %53 = vperm.xlu0 %52, %v47
    %v54 = vpop.permute.xlu0 %53
    %57 = vset.pattern.permute.xlu0 0
    %58 = vperm.xlu0 %57, %v48
    %v59 = vpop.permute.xlu0 %58
    %62 = vset.pattern.permute.xlu0 0
    %63 = vperm.xlu0 %62, %v49
    %v64 = vpop.permute.xlu0 %63
    %67 = vset.pattern.permute.xlu0 0
    %68 = vperm.xlu0 %67, %v50
    %v69 = vpop.permute.xlu0 %68
    %vm71 = vcmask 130048
    %v73 = vsel %vm71, %v43, 0
    %v76 = vsel %vm71, %v44, 0
    %v79 = vsel %vm71, %v45, 0
    %v82 = vsel %vm71, %v46, 0
    %v85 = vsel %vm71, %v27, 0
    %v88 = vsel %vm71, %v28, 0
    %v91 = vsel %vm71, %v29, 0
    %v94 = vsel %vm71, %v30, 0
    %v97 = vsel %vm71, %v31, 0
    %v100 = vsel %vm71, %v32, 0
    %v103 = vsel %vm71, %v33, 0
    %v106 = vsel %vm71, %v34, 0
    %v109 = vsel %vm71, %v35, 0
    %v112 = vsel %vm71, %v36, 0
    %v115 = vsel %vm71, %v37, 0
    %v118 = vsel %vm71, %v38, 0
    %v121 = vsel %vm71, %v39, 0
    %v124 = vsel %vm71, %v40, 0
    %v127 = vsel %vm71, %v41, 0
    %v130 = vsel %vm71, %v42, 0
    %132 = vmatpush.xpose.msra.mxu0 %v130
    %133 = vmatpush.xpose.msra.mxu0 %v127
    %134 = vmatpush.xpose.msra.mxu0 %v124
    %135 = vmatpush.xpose.msra.mxu0 %v121
    %136 = vmatpush.xpose.msra.mxu0 %v118
    %137 = vmatpush.xpose.msra.mxu0 %v115
    %138 = vmatpush.xpose.msra.mxu0 %v112
    %139 = vmatpush.xpose.msra.mxu0 %v109
    %140 = vmatpush.xpose.msra.mxu0 %v106
    %141 = vmatpush.xpose.msra.mxu0 %v103
    %142 = vmatpush.xpose.msra.mxu0 %v100
    %143 = vmatpush.xpose.msra.mxu0 %v97
    %144 = vmatpush.xpose.msra.mxu0 %v94
    %145 = vmatpush.xpose.msra.mxu0 %v91
    %146 = vmatpush.xpose.msra.mxu0 %v88
    %147 = vmatpush.xpose.msra.mxu0 %v85
    %148 = vmatmul.f32.gmra.mxu0 %v73
    %v149 = vpop.f32.mrf.mxu0
    %v150 = vadd.f32 %v54, %v149
    %151 = vmatmul.f32.gmra.mxu0 %v76
    %v152 = vpop.f32.mrf.mxu0
    %v153 = vadd.f32 %v59, %v152
    %154 = vmatmul.f32.gmra.mxu0 %v79
    %v155 = vpop.f32.mrf.mxu0
    %v156 = vadd.f32 %v64, %v155
    %157 = vmatmul.f32.gmra.mxu0 %v82
    %v158 = vpop.f32.mrf.mxu0
    %v159 = vadd.f32 %v69, %v158
    %160 = vdwg.mxu0
    %v161 = vtanh.pop %v150
    %v162 = vtanh.pop %v153
    %v163 = vtanh.pop %v156
    %v164 = vtanh.pop %v159
    %v165 = vld [vmem:[%s3] sm:$0xff]
    %v166 = vld [vmem:[%s3 + $0x8] sm:$0xff]
    %v167 = vld [vmem:[%s3 + $0x10] sm:$0xff]
    %v168 = vld [vmem:[%s3 + $0x18] sm:$0xff]
    %v169 = vld [vmem:[%s4] sm:$0xff]
    %v170 = vld [vmem:[%s4 + $0x8] sm:$0xff]
    %v171 = vld [vmem:[%s4 + $0x10] sm:$0xff]
    %v172 = vld [vmem:[%s4 + $0x18] sm:$0xff]
    %174 = vset.pattern.permute.xlu0 0
    %175 = vperm.xlu0 %174, %v169
    %v176 = vpop.permute.xlu0 %175
    %179 = vset.pattern.permute.xlu0 0
    %180 = vperm.xlu0 %179, %v170
    %v181 = vpop.permute.xlu0 %180
    %184 = vset.pattern.permute.xlu0 0
    %185 = vperm.xlu0 %184, %v171
    %v186 = vpop.permute.xlu0 %185
    %189 = vset.pattern.permute.xlu0 0
    %190 = vperm.xlu0 %189, %v172
    %v191 = vpop.permute.xlu0 %190
    %vm193 = vcmask 261120
    %v195 = vsel %vm193, %v165, 0
    %v198 = vsel %vm193, %v166, 0
    %v201 = vsel %vm193, %v167, 0
    %v204 = vsel %vm193, %v168, 0
    %206 = vmatpush.msra.mxu0 0.0
    %207 = vmatpush.msra.mxu0 0.0
    %208 = vmatpush.msra.mxu0 0.0
    %209 = vmatpush.msra.mxu0 0.0
    %210 = vmatpush.msra.mxu0 0.0
    %211 = vmatpush.msra.mxu0 0.0
    %212 = vmatpush.msra.mxu0 0.0
    %213 = vmatpush.msra.mxu0 0.0
    %214 = vmatpush.msra.mxu0 0.0
    %215 = vmatpush.msra.mxu0 0.0
    %216 = vmatpush.msra.mxu0 0.0
    %217 = vmatpush.msra.mxu0 0.0
    %218 = vmatpush.msra.mxu0 %v164
    %219 = vmatpush.msra.mxu0 %v163
    %220 = vmatpush.msra.mxu0 %v162
    %221 = vmatpush.msra.mxu0 %v161
    %222 = vmatmul.f32.gmra.mxu0 %v195
    %v223 = vpop.f32.mrf.mxu0
    %v224 = vadd.f32 %v176, %v223
    %225 = vmatmul.f32.gmra.mxu0 %v198
    %v226 = vpop.f32.mrf.mxu0
    %v227 = vadd.f32 %v181, %v226
    %228 = vmatmul.f32.gmra.mxu0 %v201
    %v229 = vpop.f32.mrf.mxu0
    %v230 = vadd.f32 %v186, %v229
    %231 = vmatmul.f32.gmra.mxu0 %v204
    %v232 = vpop.f32.mrf.mxu0
    %v233 = vadd.f32 %v191, %v232
    %234 = vdwg.mxu0
    %v235 = vtanh.pop %v224
    %v236 = vtanh.pop %v227
    %v237 = vtanh.pop %v230
    %v238 = vtanh.pop %v233
    %v239 = vld [vmem:[%s5] sm:$0xff]
    %v240 = vld [vmem:[%s6] sm:$0xff]
    %242 = vset.pattern.permute.xlu0 0
    %243 = vperm.xlu0 %242, %v240
    %v244 = vpop.permute.xlu0 %243
    %v247 = vsel %vm193, %v239, 0
    %249 = vmatpush.msra.mxu0 0.0
    %250 = vmatpush.msra.mxu0 0.0
    %251 = vmatpush.msra.mxu0 0.0
    %252 = vmatpush.msra.mxu0 0.0
    %253 = vmatpush.msra.mxu0 0.0
    %254 = vmatpush.msra.mxu0 0.0
    %255 = vmatpush.msra.mxu0 0.0
    %256 = vmatpush.msra.mxu0 0.0
    %257 = vmatpush.msra.mxu0 0.0
    %258 = vmatpush.msra.mxu0 0.0
    %259 = vmatpush.msra.mxu0 0.0
    %260 = vmatpush.msra.mxu0 0.0
    %261 = vmatpush.msra.mxu0 %v238
    %262 = vmatpush.msra.mxu0 %v237
    %263 = vmatpush.msra.mxu0 %v236
    %264 = vmatpush.msra.mxu0 %v235
    %265 = vmatmul.f32.gmra.mxu0 %v247
    %v266 = vpop.f32.mrf.mxu0
    %v267 = vadd.f32 %v244, %v266
    %268 = vdwg.mxu0
    %269 = vst [vmem:[#allocation2] sm:$0xff] %v267
    // Predicated region
    $region30: #{tpu_custom_call.1} parent=1 // pred_check
      _
    $region31: #{tpu_custom_call.1} parent=1 // pred_check_branch
      %271 = sbr.rel (0) target = $region33
    $region32: #{tpu_custom_call.1} parent=1 // pred_region
      %273 = vsyncadd [#allocation3], 0
      %s275 = sshll.u32 [#allocation2], 4
      %s276 = int_to_ptr.vmem [resolvable:$true] %s275
      %s277 = sshll.u32 %s7, 4
      %s278 = int_to_ptr.hbm [resolvable:$true] %s277
      %280 = dma.vmem_to_hbm [thread:$0]  %s276, 128, %s278, [#allocation3]
    $region33: #{tpu_custom_call.1} parent=1 // pred_fallthru
      _
    // Predicated region
    $region34: #{tpu_custom_call.1} parent=1 // pred_check
      _
    $region35: #{tpu_custom_call.1} parent=1 // pred_check_branch
      %282 = sbr.rel (0) target = $region37
    $region36: #{tpu_custom_call.1} parent=1 // pred_region
      %284 = dma.done [#allocation3], 128
    $region37: #{tpu_custom_call.1} parent=1 // pred_fallthru
      _
    %285 = vsyncpa [#allocation3], 1

</llo_original>
